<compile_context>
chip_gen: v6e
topology: v6e:2x2x1
jax: 0.10.0
libtpu: 0.0.40
codegen_flags: <defaults>
</compile_context>

<pallas_src>
import functools

import jax
import jax.numpy as jnp
from jax.experimental import pallas as pl
from jax.experimental.pallas import tpu as pltpu

_LANE = 128
_MAX_TILE = 8192


def _round_up(x, m):
    return ((x + m - 1) // m) * m


def _device_kind():
    try:
        return jax.devices()[0].device_kind.lower()
    except Exception:
        return ""


def _act_dtype_for_device(kind=None):
    """bf16 activation math where the VPU/EUP have bf16 paths (v6e/v7x)."""
    kind = _device_kind() if kind is None else kind
    if ("v6" in kind) or ("v7" in kind) or ("tpu7" in kind):
        return jnp.bfloat16
    return jnp.float32


def _pick_block_batch(B, kind):
    """Batch tile: biggest tile up to 8192 lanes.

    v7x (2 TensorCores): aim for an even grid count >= 4 so each core gets
    >= 2 pipelined steps.  v5e/v6e (single TC): one big tile; only split when
    the batch exceeds the cap."""
    b128 = _round_up(max(B, 1), _LANE)
    is_v7 = ("v7" in kind) or ("tpu7" in kind)
    if is_v7 and b128 >= 4 * 512:
        steps = max(4, pl.cdiv(b128, _MAX_TILE))
        if steps % 2:
            steps += 1
        return _round_up(pl.cdiv(b128, steps), _LANE)
    if b128 <= _MAX_TILE:
        return b128
    steps = pl.cdiv(b128, _MAX_TILE)
    return _round_up(pl.cdiv(b128, steps), _LANE)


def _generator_kernel(x_ref, w1_ref, b1_ref, w2_ref, b2_ref, w3_ref, b3_ref,
                      o_ref, *, act_dtype):
    # x_ref: (bm, in_dim) f32 (natural layout); weights bf16 (out, in);
    # biases f32 (out, 1).  All intermediates keep batch on the lane axis.
    x = x_ref[...].astype(jnp.bfloat16)                       # (bm, in)

    # --- map1 + ELU (alpha = 1.0) ---  h1 = W1 @ x^T  (A @ B^T form)
    h1 = jax.lax.dot_general(
        w1_ref[...], x, (((1,), (1,)), ((), ())),
        preferred_element_type=jnp.float32)                   # (hid, bm) f32
    h1 = h1.astype(act_dtype) + b1_ref[...].astype(act_dtype)
    one = jnp.asarray(1.0, act_dtype)
    h1 = jnp.where(h1 > 0, h1, jnp.exp(h1) - one)             # ELU

    # --- map2 + sigmoid ---
    h2 = jnp.dot(w2_ref[...], h1.astype(jnp.bfloat16),
                 preferred_element_type=jnp.float32)          # (hid, bm) f32
    h2 = h2.astype(act_dtype) + b2_ref[...].astype(act_dtype)
    h2 = 0.5 * jnp.tanh(0.5 * h2) + 0.5                       # sigmoid, 1 EUP op

    # --- map3 (no activation) ---
    y = jnp.dot(w3_ref[...], h2.astype(jnp.bfloat16),
                preferred_element_type=jnp.float32)           # (out, bm) f32
    y = y + b3_ref[...]

    # In-kernel XLU transpose -> natural (bm, out) layout; no wrapper `.T`.
    o_ref[...] = y.T.astype(o_ref.dtype)


def generator_forward(x, params, *, block_batch=None):
    """3-layer MLP forward in a single Pallas kernel.

    x: (B, input_size) float32
    params: w1(h,in), b1(h,1), w2(h,h), b2(h,1), w3(out,h), b3(out,1) float32
    returns: (B, output_size) float32
    """
    w1, b1 = params["w1"], params["b1"]
    w2, b2 = params["w2"], params["b2"]
    w3, b3 = params["w3"], params["b3"]

    B, in_dim = x.shape
    hid = w1.shape[0]
    out_dim = w3.shape[0]

    kind = _device_kind()
    act_dtype = _act_dtype_for_device(kind)

    bm = _pick_block_batch(B, kind) if block_batch is None else block_batch
    grid = (pl.cdiv(B, bm),)

    # Only the (tiny) weights are cast in the wrapper; x stays untouched.
    w1b = w1.astype(jnp.bfloat16)
    w2b = w2.astype(jnp.bfloat16)
    w3b = w3.astype(jnp.bfloat16)

    flops = 2 * B * (in_dim * hid + hid * hid + hid * out_dim)
    transcendentals = 2 * B * hid                       # exp (ELU) + tanh (sigmoid)
    param_bytes = sum(int(p.size) * p.dtype.itemsize
                      for p in (w1b, b1, w2b, b2, w3b, b3))
    bytes_accessed = (int(x.size) * x.dtype.itemsize
                      + B * out_dim * 4 + param_bytes)
    cost = pl.CostEstimate(flops=flops, transcendentals=transcendentals,
                           bytes_accessed=bytes_accessed)

    kernel = functools.partial(_generator_kernel, act_dtype=act_dtype)

    out = pl.pallas_call(
        kernel,
        out_shape=jax.ShapeDtypeStruct((B, out_dim), jnp.float32),
        grid_spec=pltpu.PrefetchScalarGridSpec(
            num_scalar_prefetch=0,
            grid=grid,
            in_specs=[
                # x: natural layout, tiled over the batch (ragged edge padded
                # by Pallas; garbage rows never written back).
                pl.BlockSpec((bm, in_dim), lambda i: (i, 0)),
                # parameters: constant index_map -> VMEM-resident across grid
                pl.BlockSpec((hid, in_dim), lambda i: (0, 0)),
                pl.BlockSpec((hid, 1), lambda i: (0, 0)),
                pl.BlockSpec((hid, hid), lambda i: (0, 0)),
                pl.BlockSpec((hid, 1), lambda i: (0, 0)),
                pl.BlockSpec((out_dim, hid), lambda i: (0, 0)),
                pl.BlockSpec((out_dim, 1), lambda i: (0, 0)),
            ],
            out_specs=pl.BlockSpec((bm, out_dim), lambda i: (i, 0)),
        ),
        compiler_params=pltpu.CompilerParams(
            dimension_semantics=("parallel",),
            vmem_limit_bytes=32 * 1024 * 1024,
        ),
        cost_estimate=cost,
    )(x, w1b, b1, w2b, b2, w3b, b3)

    return out


def init_generator_params(key, input_size, hidden_size, output_size):
    """Deterministic init mimicking nn.Linear's default U(-1/sqrt(fan_in), .).

    Weights in PyTorch orientation (out_features, in_features); biases as
    (out_features, 1) columns (added to lane-dense (out, bm) activations)."""
    ks = jax.random.split(key, 6)

    def linear(kw, kb, fan_in, fan_out):
        bound = 1.0 / jnp.sqrt(fan_in)
        w = jax.random.uniform(kw, (fan_out, fan_in), jnp.float32, -bound, bound)
        b = jax.random.uniform(kb, (fan_out, 1), jnp.float32, -bound, bound)
        return w, b

    w1, b1 = linear(ks[0], ks[1], input_size, hidden_size)
    w2, b2 = linear(ks[2], ks[3], hidden_size, hidden_size)
    w3, b3 = linear(ks[4], ks[5], hidden_size, output_size)
    return {"w1": w1, "b1": b1, "w2": w2, "b2": b2, "w3": w3, "b3": b3}


def generator_reference(x, params, act_dtype=jnp.float32):
    """Pure-JAX reference mirroring the kernel's dtype choices exactly."""
    w1 = params["w1"].astype(jnp.bfloat16)
    w2 = params["w2"].astype(jnp.bfloat16)
    w3 = params["w3"].astype(jnp.bfloat16)
    xb = x.astype(jnp.bfloat16)

    one = jnp.asarray(1.0, act_dtype)
    h1 = jax.lax.dot_general(w1, xb, (((1,), (1,)), ((), ())),
                             preferred_element_type=jnp.float32)
    h1 = h1.astype(act_dtype) + params["b1"].astype(act_dtype)
    h1 = jnp.where(h1 > 0, h1, jnp.exp(h1) - one)
    h2 = jnp.dot(w2, h1.astype(jnp.bfloat16),
                 preferred_element_type=jnp.float32)
    h2 = h2.astype(act_dtype) + params["b2"].astype(act_dtype)
    h2 = 0.5 * jnp.tanh(0.5 * h2) + 0.5
    y = jnp.dot(w3, h2.astype(jnp.bfloat16),
                preferred_element_type=jnp.float32) + params["b3"]
    return y.T.astype(jnp.float32)


if __name__ == "__main__":
    input_size, hidden_size, output_size = 16, 32, 8
    batch = 256

    key = jax.random.PRNGKey(0)
    k_x, k_p = jax.random.split(key)

    x = jax.random.normal(k_x, (batch, input_size), dtype=jnp.float32)
    params = init_generator_params(k_p, input_size, hidden_size, output_size)

    out = jax.block_until_ready(generator_forward(x, params))

    act_dtype = _act_dtype_for_device()
    ref = generator_reference(x, params, act_dtype=act_dtype)

    assert out.shape == (batch, output_size)
    assert bool(jnp.allclose(out, ref, atol=2e-2, rtol=2e-2)), \
        "mismatch vs reference"

    print("KERNEL_OK")
</pallas_src>

<mosaic_0001>
module attributes {stable_mosaic.version = 11 : i64} {
  func.func @_generator_kernel(%arg0: i32, %arg1: memref<256x16xf32, #tpu.memory_space<vmem>>, %arg2: memref<32x16xbf16, #tpu.memory_space<vmem>>, %arg3: memref<32x1xf32, #tpu.memory_space<vmem>>, %arg4: memref<32x32xbf16, #tpu.memory_space<vmem>>, %arg5: memref<32x1xf32, #tpu.memory_space<vmem>>, %arg6: memref<8x32xbf16, #tpu.memory_space<vmem>>, %arg7: memref<8x1xf32, #tpu.memory_space<vmem>>, %arg8: memref<256x8xf32, #tpu.memory_space<vmem>>) attributes {dimension_semantics = [#tpu.dimension_semantics<parallel>], iteration_bounds = array<i64: 1>, scalar_prefetch = 0 : i64, scratch_operands = 0 : i64, tpu.core_type = #tpu.core_type<tc>, window_params = [{transform_indices = @transform_0, window_bounds = array<i64: 256, 16>}, {pipeline_mode = #tpu.pipeline_mode<synchronous>, transform_indices = @transform_1, window_bounds = array<i64: 32, 16>}, {pipeline_mode = #tpu.pipeline_mode<synchronous>, transform_indices = @transform_2, window_bounds = array<i64: 32, 1>}, {pipeline_mode = #tpu.pipeline_mode<synchronous>, transform_indices = @transform_3, window_bounds = array<i64: 32, 32>}, {pipeline_mode = #tpu.pipeline_mode<synchronous>, transform_indices = @transform_4, window_bounds = array<i64: 32, 1>}, {pipeline_mode = #tpu.pipeline_mode<synchronous>, transform_indices = @transform_5, window_bounds = array<i64: 8, 32>}, {pipeline_mode = #tpu.pipeline_mode<synchronous>, transform_indices = @transform_6, window_bounds = array<i64: 8, 1>}, {transform_indices = @transform_7, window_bounds = array<i64: 256, 8>}]} {
    %c0 = arith.constant 0 : index
    %c0_0 = arith.constant 0 : index
    %0 = vector.load %arg1[%c0, %c0_0] : memref<256x16xf32, #tpu.memory_space<vmem>>, vector<256x16xf32>
    %1 = arith.truncf %0 : vector<256x16xf32> to vector<256x16xbf16>
    %c0_1 = arith.constant 0 : index
    %c0_2 = arith.constant 0 : index
    %2 = vector.load %arg2[%c0_1, %c0_2] : memref<32x16xbf16, #tpu.memory_space<vmem>>, vector<32x16xbf16>
    %cst = arith.constant dense<0.000000e+00> : vector<32x256xf32>
    %3 = tpu.matmul %2, %1, %cst {dimension_numbers = #tpu.dot_dimension_numbers<[1], [1], [0], [0], [0, 0, 1, 0], [], []>} : vector<32x16xbf16>, vector<256x16xbf16>, vector<32x256xf32> -> vector<32x256xf32>
    %c0_3 = arith.constant 0 : index
    %c0_4 = arith.constant 0 : index
    %4 = vector.load %arg3[%c0_3, %c0_4] : memref<32x1xf32, #tpu.memory_space<vmem>>, vector<32x1xf32>
    %5 = vector.broadcast %4 : vector<32x1xf32> to vector<32x256xf32>
    %6 = arith.addf %3, %5 : vector<32x256xf32>
    %cst_5 = arith.constant 0.000000e+00 : f32
    %7 = vector.broadcast %cst_5 : f32 to vector<32x256xf32>
    %8 = arith.cmpf ogt, %6, %7 : vector<32x256xf32>
    %9 = math.exp %6 : vector<32x256xf32>
    %cst_6 = arith.constant 1.000000e+00 : f32
    %10 = vector.broadcast %cst_6 : f32 to vector<32x256xf32>
    %11 = arith.subf %9, %10 : vector<32x256xf32>
    %12 = arith.select %8, %6, %11 : vector<32x256xi1>, vector<32x256xf32>
    %c0_7 = arith.constant 0 : index
    %c0_8 = arith.constant 0 : index
    %13 = vector.load %arg4[%c0_7, %c0_8] : memref<32x32xbf16, #tpu.memory_space<vmem>>, vector<32x32xbf16>
    %14 = arith.truncf %12 : vector<32x256xf32> to vector<32x256xbf16>
    %cst_9 = arith.constant dense<0.000000e+00> : vector<32x256xf32>
    %15 = tpu.matmul %13, %14, %cst_9 {dimension_numbers = #tpu.dot_dimension_numbers<[1], [0], [0], [1], [0, 0, 1, 1], [], []>} : vector<32x32xbf16>, vector<32x256xbf16>, vector<32x256xf32> -> vector<32x256xf32>
    %c0_10 = arith.constant 0 : index
    %c0_11 = arith.constant 0 : index
    %16 = vector.load %arg5[%c0_10, %c0_11] : memref<32x1xf32, #tpu.memory_space<vmem>>, vector<32x1xf32>
    %17 = vector.broadcast %16 : vector<32x1xf32> to vector<32x256xf32>
    %18 = arith.addf %15, %17 : vector<32x256xf32>
    %cst_12 = arith.constant 5.000000e-01 : f32
    %19 = vector.broadcast %cst_12 : f32 to vector<32x256xf32>
    %20 = arith.mulf %19, %18 : vector<32x256xf32>
    %21 = math.tanh %20 : vector<32x256xf32>
    %cst_13 = arith.constant 5.000000e-01 : f32
    %22 = vector.broadcast %cst_13 : f32 to vector<32x256xf32>
    %23 = arith.mulf %22, %21 : vector<32x256xf32>
    %cst_14 = arith.constant 5.000000e-01 : f32
    %24 = vector.broadcast %cst_14 : f32 to vector<32x256xf32>
    %25 = arith.addf %23, %24 : vector<32x256xf32>
    %c0_15 = arith.constant 0 : index
    %c0_16 = arith.constant 0 : index
    %26 = vector.load %arg6[%c0_15, %c0_16] : memref<8x32xbf16, #tpu.memory_space<vmem>>, vector<8x32xbf16>
    %27 = arith.truncf %25 : vector<32x256xf32> to vector<32x256xbf16>
    %cst_17 = arith.constant dense<0.000000e+00> : vector<8x256xf32>
    %28 = tpu.matmul %26, %27, %cst_17 {dimension_numbers = #tpu.dot_dimension_numbers<[1], [0], [0], [1], [0, 0, 1, 1], [], []>} : vector<8x32xbf16>, vector<32x256xbf16>, vector<8x256xf32> -> vector<8x256xf32>
    %c0_18 = arith.constant 0 : index
    %c0_19 = arith.constant 0 : index
    %29 = vector.load %arg7[%c0_18, %c0_19] : memref<8x1xf32, #tpu.memory_space<vmem>>, vector<8x1xf32>
    %30 = vector.broadcast %29 : vector<8x1xf32> to vector<8x256xf32>
    %31 = arith.addf %28, %30 : vector<8x256xf32>
    %32 = tpu.transpose %31, [1, 0] : vector<8x256xf32> -> vector<256x8xf32>
    %c0_20 = arith.constant 0 : index
    %c0_21 = arith.constant 0 : index
    %33 = vector.load %arg8[%c0_20, %c0_21] : memref<256x8xf32, #tpu.memory_space<vmem>>, vector<256x8xf32>
    tpu.vector_store %arg8[%c0_20, %c0_21], %32 {strides = array<i32>} : memref<256x8xf32, #tpu.memory_space<vmem>>, vector<256x8xf32>,
    return
  }
  func.func @transform_0(%arg0: i32) -> (i32, i32) {
    %c0_i32 = arith.constant 0 : i32
    %c0_i32_0 = arith.constant 0 : i32
    return %arg0, %c0_i32 : i32, i32
  }
  func.func @transform_1(%arg0: i32) -> (i32, i32) {
    %c0_i32 = arith.constant 0 : i32
    %c0_i32_0 = arith.constant 0 : i32
    %c0_i32_1 = arith.constant 0 : i32
    return %c0_i32, %c0_i32_0 : i32, i32
  }
  func.func @transform_2(%arg0: i32) -> (i32, i32) {
    %c0_i32 = arith.constant 0 : i32
    %c0_i32_0 = arith.constant 0 : i32
    %c0_i32_1 = arith.constant 0 : i32
    return %c0_i32, %c0_i32_0 : i32, i32
  }
  func.func @transform_3(%arg0: i32) -> (i32, i32) {
    %c0_i32 = arith.constant 0 : i32
    %c0_i32_0 = arith.constant 0 : i32
    %c0_i32_1 = arith.constant 0 : i32
    return %c0_i32, %c0_i32_0 : i32, i32
  }
  func.func @transform_4(%arg0: i32) -> (i32, i32) {
    %c0_i32 = arith.constant 0 : i32
    %c0_i32_0 = arith.constant 0 : i32
    %c0_i32_1 = arith.constant 0 : i32
    return %c0_i32, %c0_i32_0 : i32, i32
  }
  func.func @transform_5(%arg0: i32) -> (i32, i32) {
    %c0_i32 = arith.constant 0 : i32
    %c0_i32_0 = arith.constant 0 : i32
    %c0_i32_1 = arith.constant 0 : i32
    return %c0_i32, %c0_i32_0 : i32, i32
  }
  func.func @transform_6(%arg0: i32) -> (i32, i32) {
    %c0_i32 = arith.constant 0 : i32
    %c0_i32_0 = arith.constant 0 : i32
    %c0_i32_1 = arith.constant 0 : i32
    return %c0_i32, %c0_i32_0 : i32, i32
  }
  func.func @transform_7(%arg0: i32) -> (i32, i32) {
    %c0_i32 = arith.constant 0 : i32
    %c0_i32_0 = arith.constant 0 : i32
    return %arg0, %c0_i32 : i32, i32
  }
}

</mosaic_0001>

<llo_original>
// kernel: tpu_custom_call.1
$region0: #{tpu_custom_call.1}
  #allocation0 [shape = 'u32[]', space=smem, size = 0x4, offset = 0x4, fixed_abs, tag = 'smem constant byte address 0x4 - core index']
  #allocation1 [shape = 'u32[144,128]{1,0:T(1,128)}', space=vmem, size = 0x12000, scoped, tag = 'internal scratch']
  %s0 = inlined_call_operand.vmem [shape: f32[256,16], index: 0, kind: input, shape index: {}]
  %s1 = inlined_call_operand.vmem [shape: bf16[32,16], index: 1, kind: input, shape index: {}]
  %s2 = inlined_call_operand.vmem [shape: f32[32,1], index: 2, kind: input, shape index: {}]
  %s3 = inlined_call_operand.vmem [shape: bf16[32,32], index: 3, kind: input, shape index: {}]
  %s4 = inlined_call_operand.vmem [shape: f32[32,1], index: 4, kind: input, shape index: {}]
  %s5 = inlined_call_operand.vmem [shape: bf16[8,32], index: 5, kind: input, shape index: {}]
  %s6 = inlined_call_operand.vmem [shape: f32[8,1], index: 6, kind: input, shape index: {}]
  %s7 = inlined_call_operand.vmem [shape: f32[256,8], index: 7, kind: output, shape index: {}]
  %s8 = sld [smem:[#allocation0]]
  $region38: #{tpu_custom_call.1} parent=0
    _
  %s10 = ssub.s32 1, %s8
  %s11 = scalar_select 0, %s10, %s8
  // Predicated region
  $region2: #{tpu_custom_call.1} parent=0 // pred_check
    _
  $region3: #{tpu_custom_call.1} parent=0 // pred_check_branch
    %13 = sbr.rel (0) target = $region5
  $region4: #{tpu_custom_call.1} parent=0 // pred_region
    _
  $region5: #{tpu_custom_call.1} parent=0 // pred_fallthru
    _
  // Predicated region
  $region6: #{tpu_custom_call.1} parent=0 // pred_check
    _
  $region7: #{tpu_custom_call.1} parent=0 // pred_check_branch
    %15 = sbr.rel (0) target = $region9
  $region8: #{tpu_custom_call.1} parent=0 // pred_region
    _
  $region9: #{tpu_custom_call.1} parent=0 // pred_fallthru
    _
  // Predicated region
  $region10: #{tpu_custom_call.1} parent=0 // pred_check
    _
  $region11: #{tpu_custom_call.1} parent=0 // pred_check_branch
    %17 = sbr.rel (0) target = $region13
  $region12: #{tpu_custom_call.1} parent=0 // pred_region
    _
  $region13: #{tpu_custom_call.1} parent=0 // pred_fallthru
    _
  // Predicated region
  $region14: #{tpu_custom_call.1} parent=0 // pred_check
    _
  $region15: #{tpu_custom_call.1} parent=0 // pred_check_branch
    %19 = sbr.rel (0) target = $region17
  $region16: #{tpu_custom_call.1} parent=0 // pred_region
    _
  $region17: #{tpu_custom_call.1} parent=0 // pred_fallthru
    _
  // Predicated region
  $region18: #{tpu_custom_call.1} parent=0 // pred_check
    _
  $region19: #{tpu_custom_call.1} parent=0 // pred_check_branch
    %21 = sbr.rel (0) target = $region21
  $region20: #{tpu_custom_call.1} parent=0 // pred_region
    _
  $region21: #{tpu_custom_call.1} parent=0 // pred_fallthru
    _
  // Predicated region
  $region22: #{tpu_custom_call.1} parent=0 // pred_check
    _
  $region23: #{tpu_custom_call.1} parent=0 // pred_check_branch
    %23 = sbr.rel (0) target = $region25
  $region24: #{tpu_custom_call.1} parent=0 // pred_region
    _
  $region25: #{tpu_custom_call.1} parent=0 // pred_fallthru
    _
  // Predicated region
  $region26: #{tpu_custom_call.1} parent=0 // pred_check
    _
  $region27: #{tpu_custom_call.1} parent=0 // pred_check_branch
    %25 = sbr.rel (0) target = $region29
  $region28: #{tpu_custom_call.1} parent=0 // pred_region
    _
  $region29: #{tpu_custom_call.1} parent=0 // pred_fallthru
    _
  %v27 = vld [vmem:[%s0] sm:$0xff]
  %v28 = vld [vmem:[%s0 + $0x8] sm:$0xff]
  %v29 = vld [vmem:[%s0 + $0x10] sm:$0xff]
  %v30 = vld [vmem:[%s0 + $0x18] sm:$0xff]
  %v31 = vld [vmem:[%s0 + $0x20] sm:$0xff]
  %v32 = vld [vmem:[%s0 + $0x28] sm:$0xff]
  %v33 = vld [vmem:[%s0 + $0x30] sm:$0xff]
  %v34 = vld [vmem:[%s0 + $0x38] sm:$0xff]
  %v35 = vld [vmem:[%s0 + $0x40] sm:$0xff]
  %v36 = vld [vmem:[%s0 + $0x48] sm:$0xff]
  %v37 = vld [vmem:[%s0 + $0x50] sm:$0xff]
  %v38 = vld [vmem:[%s0 + $0x58] sm:$0xff]
  %v39 = vld [vmem:[%s0 + $0x60] sm:$0xff]
  %v40 = vld [vmem:[%s0 + $0x68] sm:$0xff]
  %v41 = vld [vmem:[%s0 + $0x70] sm:$0xff]
  %v42 = vld [vmem:[%s0 + $0x78] sm:$0xff]
  %v43 = vld [vmem:[%s0 + $0x80] sm:$0xff]
  %v44 = vld [vmem:[%s0 + $0x88] sm:$0xff]
  %v45 = vld [vmem:[%s0 + $0x90] sm:$0xff]
  %v46 = vld [vmem:[%s0 + $0x98] sm:$0xff]
  %v47 = vld [vmem:[%s0 + $0xa0] sm:$0xff]
  %v48 = vld [vmem:[%s0 + $0xa8] sm:$0xff]
  %v49 = vld [vmem:[%s0 + $0xb0] sm:$0xff]
  %v50 = vld [vmem:[%s0 + $0xb8] sm:$0xff]
  %v51 = vld [vmem:[%s0 + $0xc0] sm:$0xff]
  %v52 = vld [vmem:[%s0 + $0xc8] sm:$0xff]
  %v53 = vld [vmem:[%s0 + $0xd0] sm:$0xff]
  %v54 = vld [vmem:[%s0 + $0xd8] sm:$0xff]
  %v55 = vld [vmem:[%s0 + $0xe0] sm:$0xff]
  %v56 = vld [vmem:[%s0 + $0xe8] sm:$0xff]
  %v57 = vld [vmem:[%s0 + $0xf0] sm:$0xff]
  %v58 = vld [vmem:[%s0 + $0xf8] sm:$0xff]
  %v59 = vpack.c.bf16 %v28, %v27
  %v60 = vpack.c.bf16 %v30, %v29
  %v61 = vpack.c.bf16 %v32, %v31
  %v62 = vpack.c.bf16 %v34, %v33
  %v63 = vpack.c.bf16 %v36, %v35
  %v64 = vpack.c.bf16 %v38, %v37
  %v65 = vpack.c.bf16 %v40, %v39
  %v66 = vpack.c.bf16 %v42, %v41
  %v67 = vpack.c.bf16 %v44, %v43
  %v68 = vpack.c.bf16 %v46, %v45
  %v69 = vpack.c.bf16 %v48, %v47
  %v70 = vpack.c.bf16 %v50, %v49
  %v71 = vpack.c.bf16 %v52, %v51
  %v72 = vpack.c.bf16 %v54, %v53
  %v73 = vpack.c.bf16 %v56, %v55
  %v74 = vpack.c.bf16 %v58, %v57
  %v75 = vld [vmem:[%s1] sm:$0xf]
  %v76 = vld [vmem:[%s1 + $0x4] sm:$0xf]
  %v77 = vld [vmem:[%s1 + $0x8] sm:$0xf]
  %v78 = vld [vmem:[%s1 + $0xc] sm:$0xf]
  %v79 = vld [vmem:[%s2] sm:$0xff]
  %v80 = vld [vmem:[%s2 + $0x8] sm:$0xff]
  %v81 = vld [vmem:[%s2 + $0x10] sm:$0xff]
  %v82 = vld [vmem:[%s2 + $0x18] sm:$0xff]
  %84 = vset.pattern.permute.xlu0 0
  %85 = vperm.xlu0 %84, %v79
  %v86 = vpop.permute.xlu0 %85
  %89 = vset.pattern.permute.xlu0 0
  %90 = vperm.xlu0 %89, %v80
  %v91 = vpop.permute.xlu0 %90
  %94 = vset.pattern.permute.xlu0 0
  %95 = vperm.xlu0 %94, %v81
  %v96 = vpop.permute.xlu0 %95
  %99 = vset.pattern.permute.xlu0 0
  %100 = vperm.xlu0 %99, %v82
  %v101 = vpop.permute.xlu0 %100
  %v107 = vunpack.c.l.b16 %v75
  %v108 = vunpack.c.l.b16 %v76
  %v109 = vunpack.c.l.b16 %v77
  %v110 = vunpack.c.l.b16 %v78
  %v111 = vpack.c.b16 %v108, %v107
  %v112 = vpack.c.b16 %v110, %v109
  %vm113 = vcmask 130048
  %v115 = vsel %vm113, %v111, 0
  %v118 = vsel %vm113, %v112, 0
  %v121 = vsel %vm113, %v59, 0
  %v124 = vsel %vm113, %v60, 0
  %v127 = vsel %vm113, %v61, 0
  %v130 = vsel %vm113, %v62, 0
  %v133 = vsel %vm113, %v63, 0
  %v136 = vsel %vm113, %v64, 0
  %v139 = vsel %vm113, %v65, 0
  %v142 = vsel %vm113, %v66, 0
  %v145 = vsel %vm113, %v67, 0
  %v148 = vsel %vm113, %v68, 0
  %v151 = vsel %vm113, %v69, 0
  %v154 = vsel %vm113, %v70, 0
  %v157 = vsel %vm113, %v71, 0
  %v160 = vsel %vm113, %v72, 0
  %v163 = vsel %vm113, %v73, 0
  %v166 = vsel %vm113, %v74, 0
  %168 = vmatprep.subr.bf16.mxu0 0
  %169 = vmatpush1.bf16.xpose.msra.mxu0 %v142
  %170 = vmatprep.subr.bf16.mxu0 0
  %171 = vmatpush1.bf16.xpose.msra.mxu0 %v139
  %172 = vmatprep.subr.bf16.mxu0 0
  %173 = vmatpush1.bf16.xpose.msra.mxu0 %v136
  %174 = vmatprep.subr.bf16.mxu0 0
  %175 = vmatpush1.bf16.xpose.msra.mxu0 %v133
  %176 = vmatprep.subr.bf16.mxu0 0
  %177 = vmatpush1.bf16.xpose.msra.mxu0 %v130
  %178 = vmatprep.subr.bf16.mxu0 0
  %179 = vmatpush1.bf16.xpose.msra.mxu0 %v127
  %180 = vmatprep.subr.bf16.mxu0 0
  %181 = vmatpush1.bf16.xpose.msra.mxu0 %v124
  %182 = vmatprep.subr.bf16.mxu0 0
  %183 = vmatpush1.bf16.xpose.msra.mxu0 %v121
  %184 = vmatprep.subr.bf16.mxu0 0
  %185 = vmatpush2.bf16.xpose.msra.mxu0 %v166
  %186 = vmatprep.subr.bf16.mxu0 0
  %187 = vmatpush2.bf16.xpose.msra.mxu0 %v163
  %188 = vmatprep.subr.bf16.mxu0 0
  %189 = vmatpush2.bf16.xpose.msra.mxu0 %v160
  %190 = vmatprep.subr.bf16.mxu0 0
  %191 = vmatpush2.bf16.xpose.msra.mxu0 %v157
  %192 = vmatprep.subr.bf16.mxu0 0
  %193 = vmatpush2.bf16.xpose.msra.mxu0 %v154
  %194 = vmatprep.subr.bf16.mxu0 0
  %195 = vmatpush2.bf16.xpose.msra.mxu0 %v151
  %196 = vmatprep.subr.bf16.mxu0 0
  %197 = vmatpush2.bf16.xpose.msra.mxu0 %v148
  %198 = vmatprep.subr.bf16.mxu0 0
  %199 = vmatpush2.bf16.xpose.msra.mxu0 %v145
  %200 = vmatprep.mubr.bf16.mxu0 0
  %201 = vmatmul.mubr.bf16.gmra.mxu0 %v115
  %v202 = vpop.f32.mrf.mxu0
  %v203 = vadd.f32 %v86, %v202
  %v204 = vpop.f32.mrf.mxu0
  %v205 = vadd.f32 %v86, %v204
  %v206 = vpop.f32.mrf.mxu0
  %v207 = vadd.f32 %v91, %v206
  %v208 = vpop.f32.mrf.mxu0
  %v209 = vadd.f32 %v91, %v208
  %210 = vmatprep.mubr.bf16.mxu0 0
  %211 = vmatmul.mubr.bf16.gmra.mxu0 %v118
  %v212 = vpop.f32.mrf.mxu0
  %v213 = vadd.f32 %v96, %v212
  %v214 = vpop.f32.mrf.mxu0
  %v215 = vadd.f32 %v96, %v214
  %v216 = vpop.f32.mrf.mxu0
  %v217 = vadd.f32 %v101, %v216
  %v218 = vpop.f32.mrf.mxu0
  %v219 = vadd.f32 %v101, %v218
  %220 = vdwg.mxu0
  %vm221 = vcmp.gt.f32.partialorder %v203, 0.0
  %vm222 = vcmp.gt.f32.partialorder %v205, 0.0
  %vm223 = vcmp.gt.f32.partialorder %v207, 0.0
  %vm224 = vcmp.gt.f32.partialorder %v209, 0.0
  %vm225 = vcmp.gt.f32.partialorder %v213, 0.0
  %vm226 = vcmp.gt.f32.partialorder %v215, 0.0
  %vm227 = vcmp.gt.f32.partialorder %v217, 0.0
  %vm228 = vcmp.gt.f32.partialorder %v219, 0.0
  %v229 = vmul.f32 %v203, 1.442695
  %v230 = vpow.pop %v229
  %v231 = vmul.f32 %v205, 1.442695
  %v232 = vpow.pop %v231
  %v233 = vmul.f32 %v207, 1.442695
  %v234 = vpow.pop %v233
  %v235 = vmul.f32 %v209, 1.442695
  %v236 = vpow.pop %v235
  %v237 = vmul.f32 %v213, 1.442695
  %v238 = vpow.pop %v237
  %v239 = vmul.f32 %v215, 1.442695
  %v240 = vpow.pop %v239
  %v241 = vmul.f32 %v217, 1.442695
  %v242 = vpow.pop %v241
  %v243 = vmul.f32 %v219, 1.442695
  %v244 = vpow.pop %v243
  %v245 = vsub.f32 %v230, 1.0
  %v246 = vsub.f32 %v232, 1.0
  %v247 = vsub.f32 %v234, 1.0
  %v248 = vsub.f32 %v236, 1.0
  %v249 = vsub.f32 %v238, 1.0
  %v250 = vsub.f32 %v240, 1.0
  %v251 = vsub.f32 %v242, 1.0
  %v252 = vsub.f32 %v244, 1.0
  %v253 = vsel %vm221, %v203, %v245
  %v254 = vsel %vm222, %v205, %v246
  %v255 = vsel %vm223, %v207, %v247
  %v256 = vsel %vm224, %v209, %v248
  %v257 = vsel %vm225, %v213, %v249
  %v258 = vsel %vm226, %v215, %v250
  %v259 = vsel %vm227, %v217, %v251
  %v260 = vsel %vm228, %v219, %v252
  %v261 = vld [vmem:[%s3] sm:$0xf]
  %v262 = vld [vmem:[%s3 + $0x4] sm:$0xf]
  %v263 = vld [vmem:[%s3 + $0x8] sm:$0xf]
  %v264 = vld [vmem:[%s3 + $0xc] sm:$0xf]
  %v265 = vpack.c.bf16 %v255, %v253
  %v266 = vpack.c.bf16 %v256, %v254
  %v267 = vpack.c.bf16 %v259, %v257
  %v268 = vpack.c.bf16 %v260, %v258
  %v269 = vld [vmem:[%s4] sm:$0xff]
  %v270 = vld [vmem:[%s4 + $0x8] sm:$0xff]
  %v271 = vld [vmem:[%s4 + $0x10] sm:$0xff]
  %v272 = vld [vmem:[%s4 + $0x18] sm:$0xff]
  %274 = vset.pattern.permute.xlu0 0
  %275 = vperm.xlu0 %274, %v269
  %v276 = vpop.permute.xlu0 %275
  %279 = vset.pattern.permute.xlu0 0
  %280 = vperm.xlu0 %279, %v270
  %v281 = vpop.permute.xlu0 %280
  %284 = vset.pattern.permute.xlu0 0
  %285 = vperm.xlu0 %284, %v271
  %v286 = vpop.permute.xlu0 %285
  %289 = vset.pattern.permute.xlu0 0
  %290 = vperm.xlu0 %289, %v272
  %v291 = vpop.permute.xlu0 %290
  %v297 = vunpack.c.l.b16 %v261
  %v298 = vunpack.c.l.b16 %v262
  %v299 = vunpack.c.l.b16 %v263
  %v300 = vunpack.c.l.b16 %v264
  %v301 = vpack.c.b16 %v298, %v297
  %v302 = vpack.c.b16 %v300, %v299
  %vm303 = vcmask 261120
  %v305 = vsel %vm303, %v301, 0
  %v308 = vsel %vm303, %v302, 0
  %310 = vmatprep.subr.bf16.mxu0 0
  %311 = vmatpush1.bf16.msra.mxu0 0
  %312 = vmatprep.subr.bf16.mxu0 0
  %313 = vmatpush1.bf16.msra.mxu0 0
  %314 = vmatprep.subr.bf16.mxu0 0
  %315 = vmatpush1.bf16.msra.mxu0 0
  %316 = vmatprep.subr.bf16.mxu0 0
  %317 = vmatpush1.bf16.msra.mxu0 0
  %318 = vmatprep.subr.bf16.mxu0 0
  %319 = vmatpush1.bf16.msra.mxu0 0
  %320 = vmatprep.subr.bf16.mxu0 0
  %321 = vmatpush1.bf16.msra.mxu0 0
  %322 = vmatprep.subr.bf16.mxu0 %v268
  %323 = vmatpush1.bf16.msra.mxu0 %v267
  %324 = vmatprep.subr.bf16.mxu0 %v266
  %325 = vmatpush1.bf16.msra.mxu0 %v265
  %326 = vmatprep.subr.bf16.mxu0 0
  %327 = vmatpush2.bf16.msra.mxu0 0
  %328 = vmatprep.subr.bf16.mxu0 0
  %329 = vmatpush2.bf16.msra.mxu0 0
  %330 = vmatprep.subr.bf16.mxu0 0
  %331 = vmatpush2.bf16.msra.mxu0 0
  %332 = vmatprep.subr.bf16.mxu0 0
  %333 = vmatpush2.bf16.msra.mxu0 0
  %334 = vmatprep.subr.bf16.mxu0 0
  %335 = vmatpush2.bf16.msra.mxu0 0
  %336 = vmatprep.subr.bf16.mxu0 0
  %337 = vmatpush2.bf16.msra.mxu0 0
  %338 = vmatprep.subr.bf16.mxu0 0
  %339 = vmatpush2.bf16.msra.mxu0 0
  %340 = vmatprep.subr.bf16.mxu0 0
  %341 = vmatpush2.bf16.msra.mxu0 0
  %342 = vmatprep.mubr.bf16.mxu0 0
  %343 = vmatmul.mubr.bf16.gmra.mxu0 %v305
  %v344 = vpop.f32.mrf.mxu0
  %v345 = vadd.f32 %v276, %v344
  %v346 = vpop.f32.mrf.mxu0
  %v347 = vadd.f32 %v276, %v346
  %v348 = vpop.f32.mrf.mxu0
  %v349 = vadd.f32 %v281, %v348
  %v350 = vpop.f32.mrf.mxu0
  %v351 = vadd.f32 %v281, %v350
  %352 = vmatprep.mubr.bf16.mxu0 0
  %353 = vmatmul.mubr.bf16.gmra.mxu0 %v308
  %v354 = vpop.f32.mrf.mxu0
  %v355 = vadd.f32 %v286, %v354
  %v356 = vpop.f32.mrf.mxu0
  %v357 = vadd.f32 %v286, %v356
  %v358 = vpop.f32.mrf.mxu0
  %v359 = vadd.f32 %v291, %v358
  %v360 = vpop.f32.mrf.mxu0
  %v361 = vadd.f32 %v291, %v360
  %362 = vdwg.mxu0
  %v363 = vmul.f32 %v345, 0.5
  %v364 = vmul.f32 %v347, 0.5
  %v365 = vmul.f32 %v349, 0.5
  %v366 = vmul.f32 %v351, 0.5
  %v367 = vmul.f32 %v355, 0.5
  %v368 = vmul.f32 %v357, 0.5
  %v369 = vmul.f32 %v359, 0.5
  %v370 = vmul.f32 %v361, 0.5
  %v371 = vtanh.pop %v363
  %v372 = vtanh.pop %v364
  %v373 = vtanh.pop %v365
  %v374 = vtanh.pop %v366
  %v375 = vtanh.pop %v367
  %v376 = vtanh.pop %v368
  %v377 = vtanh.pop %v369
  %v378 = vtanh.pop %v370
  %v379 = vmul.f32 %v371, 0.5
  %v380 = vmul.f32 %v372, 0.5
  %v381 = vmul.f32 %v373, 0.5
  %v382 = vmul.f32 %v374, 0.5
  %v383 = vmul.f32 %v375, 0.5
  %v384 = vmul.f32 %v376, 0.5
  %v385 = vmul.f32 %v377, 0.5
  %v386 = vmul.f32 %v378, 0.5
  %v387 = vadd.f32 %v379, 0.5
  %v388 = vadd.f32 %v380, 0.5
  %v389 = vadd.f32 %v381, 0.5
  %v390 = vadd.f32 %v382, 0.5
  %v391 = vadd.f32 %v383, 0.5
  %v392 = vadd.f32 %v384, 0.5
  %v393 = vadd.f32 %v385, 0.5
  %v394 = vadd.f32 %v386, 0.5
  %v395 = vld [vmem:[%s5] sm:$0xf]
  %v396 = vpack.c.bf16 %v389, %v387
  %v397 = vpack.c.bf16 %v390, %v388
  %v398 = vpack.c.bf16 %v393, %v391
  %v399 = vpack.c.bf16 %v394, %v392
  %v400 = vld [vmem:[%s6] sm:$0xff]
  %402 = vset.pattern.permute.xlu0 0
  %403 = vperm.xlu0 %402, %v400
  %v404 = vpop.permute.xlu0 %403
  %v407 = vsel %vm303, %v395, 0
  %409 = vmatprep.subr.bf16.mxu0 0
  %410 = vmatpush1.bf16.msra.mxu0 0
  %411 = vmatprep.subr.bf16.mxu0 0
  %412 = vmatpush1.bf16.msra.mxu0 0
  %413 = vmatprep.subr.bf16.mxu0 0
  %414 = vmatpush1.bf16.msra.mxu0 0
  %415 = vmatprep.subr.bf16.mxu0 0
  %416 = vmatpush1.bf16.msra.mxu0 0
  %417 = vmatprep.subr.bf16.mxu0 0
  %418 = vmatpush1.bf16.msra.mxu0 0
  %419 = vmatprep.subr.bf16.mxu0 0
  %420 = vmatpush1.bf16.msra.mxu0 0
  %421 = vmatprep.subr.bf16.mxu0 %v399
  %422 = vmatpush1.bf16.msra.mxu0 %v398
  %423 = vmatprep.subr.bf16.mxu0 %v397
  %424 = vmatpush1.bf16.msra.mxu0 %v396
  %425 = vmatprep.subr.bf16.mxu0 0
  %426 = vmatpush2.bf16.msra.mxu0 0
  %427 = vmatprep.subr.bf16.mxu0 0
  %428 = vmatpush2.bf16.msra.mxu0 0
  %429 = vmatprep.subr.bf16.mxu0 0
  %430 = vmatpush2.bf16.msra.mxu0 0
  %431 = vmatprep.subr.bf16.mxu0 0
  %432 = vmatpush2.bf16.msra.mxu0 0
  %433 = vmatprep.subr.bf16.mxu0 0
  %434 = vmatpush2.bf16.msra.mxu0 0
  %435 = vmatprep.subr.bf16.mxu0 0
  %436 = vmatpush2.bf16.msra.mxu0 0
  %437 = vmatprep.subr.bf16.mxu0 0
  %438 = vmatpush2.bf16.msra.mxu0 0
  %439 = vmatprep.subr.bf16.mxu0 0
  %440 = vmatpush2.bf16.msra.mxu0 0
  %441 = vmatprep.mubr.bf16.mxu0 0
  %442 = vmatmul.mubr.bf16.gmra.mxu0 %v407
  %v443 = vpop.f32.mrf.mxu0
  %v444 = vadd.f32 %v404, %v443
  %v445 = vpop.f32.mrf.mxu0
  %v446 = vadd.f32 %v404, %v445
  %v447 = vpop.f32.mrf.mxu0
  %v448 = vpop.f32.mrf.mxu0
  %449 = vdwg.mxu0
  %450 = vxpose.xlu0.b32.start [1/16] %v444, 128
  %451 = vxpose.xlu0.b32.cont [2/16] 0.0, 128
  %452 = vxpose.xlu0.b32.cont [3/16] 0.0, 128
  %453 = vxpose.xlu0.b32.cont [4/16] 0.0, 128
  %454 = vxpose.xlu0.b32.cont [5/16] 0.0, 128
  %455 = vxpose.xlu0.b32.cont [6/16] 0.0, 128
  %456 = vxpose.xlu0.b32.cont [7/16] 0.0, 128
  %457 = vxpose.xlu0.b32.cont [8/16] 0.0, 128
  %458 = vxpose.xlu0.b32.cont [9/16] 0.0, 128
  %459 = vxpose.xlu0.b32.cont [10/16] 0.0, 128
  %460 = vxpose.xlu0.b32.cont [11/16] 0.0, 128
  %461 = vxpose.xlu0.b32.cont [12/16] 0.0, 128
  %462 = vxpose.xlu0.b32.cont [13/16] 0.0, 128
  %463 = vxpose.xlu0.b32.cont [14/16] 0.0, 128
  %464 = vxpose.xlu0.b32.cont [15/16] 0.0, 128
  %465 = vxpose.xlu0.b32.end [16/16] 0.0, 128
  %v466 = vpop.trf.xlu0
  %v467 = vpop.trf.xlu0
  %v468 = vpop.trf.xlu0
  %v469 = vpop.trf.xlu0
  %v470 = vpop.trf.xlu0
  %v471 = vpop.trf.xlu0
  %v472 = vpop.trf.xlu0
  %v473 = vpop.trf.xlu0
  %v474 = vpop.trf.xlu0
  %v475 = vpop.trf.xlu0
  %v476 = vpop.trf.xlu0
  %v477 = vpop.trf.xlu0
  %v478 = vpop.trf.xlu0
  %v479 = vpop.trf.xlu0
  %v480 = vpop.trf.xlu0
  %v481 = vpop.trf.xlu0
  %482 = vxpose.xlu0.b32.start [1/16] %v446, 128
  %483 = vxpose.xlu0.b32.cont [2/16] 0.0, 128
  %484 = vxpose.xlu0.b32.cont [3/16] 0.0, 128
  %485 = vxpose.xlu0.b32.cont [4/16] 0.0, 128
  %486 = vxpose.xlu0.b32.cont [5/16] 0.0, 128
  %487 = vxpose.xlu0.b32.cont [6/16] 0.0, 128
  %488 = vxpose.xlu0.b32.cont [7/16] 0.0, 128
  %489 = vxpose.xlu0.b32.cont [8/16] 0.0, 128
  %490 = vxpose.xlu0.b32.cont [9/16] 0.0, 128
  %491 = vxpose.xlu0.b32.cont [10/16] 0.0, 128
  %492 = vxpose.xlu0.b32.cont [11/16] 0.0, 128
  %493 = vxpose.xlu0.b32.cont [12/16] 0.0, 128
  %494 = vxpose.xlu0.b32.cont [13/16] 0.0, 128
  %495 = vxpose.xlu0.b32.cont [14/16] 0.0, 128
  %496 = vxpose.xlu0.b32.cont [15/16] 0.0, 128
  %497 = vxpose.xlu0.b32.end [16/16] 0.0, 128
  %v498 = vpop.trf.xlu0
  %v499 = vpop.trf.xlu0
  %v500 = vpop.trf.xlu0
  %v501 = vpop.trf.xlu0
  %v502 = vpop.trf.xlu0
  %v503 = vpop.trf.xlu0
  %v504 = vpop.trf.xlu0
  %v505 = vpop.trf.xlu0
  %v506 = vpop.trf.xlu0
  %v507 = vpop.trf.xlu0
  %v508 = vpop.trf.xlu0
  %v509 = vpop.trf.xlu0
  %v510 = vpop.trf.xlu0
  %v511 = vpop.trf.xlu0
  %v512 = vpop.trf.xlu0
  %v513 = vpop.trf.xlu0
  %vm514 = vcmask 64512
  %515 = vst.msk [vmem:[%s7] sm:$0xff] %vm514, %v466
  %516 = vst.msk [vmem:[%s7 + $0x8] sm:$0xff] %vm514, %v467
  %517 = vst.msk [vmem:[%s7 + $0x10] sm:$0xff] %vm514, %v468
  %518 = vst.msk [vmem:[%s7 + $0x18] sm:$0xff] %vm514, %v469
  %519 = vst.msk [vmem:[%s7 + $0x20] sm:$0xff] %vm514, %v470
  %520 = vst.msk [vmem:[%s7 + $0x28] sm:$0xff] %vm514, %v471
  %521 = vst.msk [vmem:[%s7 + $0x30] sm:$0xff] %vm514, %v472
  %522 = vst.msk [vmem:[%s7 + $0x38] sm:$0xff] %vm514, %v473
  %523 = vst.msk [vmem:[%s7 + $0x40] sm:$0xff] %vm514, %v474
  %524 = vst.msk [vmem:[%s7 + $0x48] sm:$0xff] %vm514, %v475
  %525 = vst.msk [vmem:[%s7 + $0x50] sm:$0xff] %vm514, %v476
  %526 = vst.msk [vmem:[%s7 + $0x58] sm:$0xff] %vm514, %v477
  %527 = vst.msk [vmem:[%s7 + $0x60] sm:$0xff] %vm514, %v478
  %528 = vst.msk [vmem:[%s7 + $0x68] sm:$0xff] %vm514, %v479
  %529 = vst.msk [vmem:[%s7 + $0x70] sm:$0xff] %vm514, %v480
  %530 = vst.msk [vmem:[%s7 + $0x78] sm:$0xff] %vm514, %v481
  %531 = vst.msk [vmem:[%s7 + $0x80] sm:$0xff] %vm514, %v498
  %532 = vst.msk [vmem:[%s7 + $0x88] sm:$0xff] %vm514, %v499
  %533 = vst.msk [vmem:[%s7 + $0x90] sm:$0xff] %vm514, %v500
  %534 = vst.msk [vmem:[%s7 + $0x98] sm:$0xff] %vm514, %v501
  %535 = vst.msk [vmem:[%s7 + $0xa0] sm:$0xff] %vm514, %v502
  %536 = vst.msk [vmem:[%s7 + $0xa8] sm:$0xff] %vm514, %v503
  %537 = vst.msk [vmem:[%s7 + $0xb0] sm:$0xff] %vm514, %v504
  %538 = vst.msk [vmem:[%s7 + $0xb8] sm:$0xff] %vm514, %v505
  %539 = vst.msk [vmem:[%s7 + $0xc0] sm:$0xff] %vm514, %v506
  %540 = vst.msk [vmem:[%s7 + $0xc8] sm:$0xff] %vm514, %v507
  %541 = vst.msk [vmem:[%s7 + $0xd0] sm:$0xff] %vm514, %v508
  %542 = vst.msk [vmem:[%s7 + $0xd8] sm:$0xff] %vm514, %v509
  %543 = vst.msk [vmem:[%s7 + $0xe0] sm:$0xff] %vm514, %v510
  %544 = vst.msk [vmem:[%s7 + $0xe8] sm:$0xff] %vm514, %v511
  %545 = vst.msk [vmem:[%s7 + $0xf0] sm:$0xff] %vm514, %v512
  %546 = vst.msk [vmem:[%s7 + $0xf8] sm:$0xff] %vm514, %v513
  // Predicated region
  $region30: #{tpu_custom_call.1} parent=0 // pred_check
    _
  $region31: #{tpu_custom_call.1} parent=0 // pred_check_branch
    %548 = sbr.rel (0) target = $region33
  $region32: #{tpu_custom_call.1} parent=0 // pred_region
    _
  $region33: #{tpu_custom_call.1} parent=0 // pred_fallthru
    _
  // Predicated region
  $region34: #{tpu_custom_call.1} parent=0 // pred_check
    _
  $region35: #{tpu_custom_call.1} parent=0 // pred_check_branch
    %550 = sbr.rel (0) target = $region37
  $region36: #{tpu_custom_call.1} parent=0 // pred_region
    _
  $region37: #{tpu_custom_call.1} parent=0 // pred_fallthru
    _

</llo_original>
